<compile_context>
chip_gen: v6e
topology: v6e:2x2x1
jax: 0.10.0
libtpu: 0.0.40
codegen_flags: <defaults>
</compile_context>

<pallas_src>
import functools

import jax
import jax.numpy as jnp
from jax.experimental import pallas as pl
from jax.experimental.pallas import tpu as pltpu


def _round_up(n, m):
    return -(-n // m) * m


def _vmem_limit_bytes():
    """Generation-aware VMEM limit (~3/4 of physical, capped at 96 MiB)."""
    try:
        cap = int(pltpu.get_tpu_info().vmem_capacity_bytes)
    except Exception:
        cap = 128 * 1024 * 1024
    return int(min(cap * 3 // 4, 96 * 1024 * 1024))


def _conv_bn_lrelu_kernel(w_ref, shift_ref, x_ref, o_ref, acc_ref, strip_ref, *,
                          tap_offsets, out_lanes, cin_tile, negative_slope):
    """One (batch, spatial_tile, cin_tile) grid step.

    w_ref:     (1, C_out_pad, K*K*cin_tile)  BN-scale-folded weights
    shift_ref: (C_out_pad, 1) f32            folded BN shift
    x_ref:     (1, 1, cin_tile, Lt_halo)     padded, flattened input tile (+halo)
    o_ref:     (1, C_out_pad, Lt)            lane-dense output tile
    acc_ref:   (C_out_pad, Lt) f32           accumulator (persists across ci)
    strip_ref: (K*K*cin_tile, Lt)            packed shifted-tap strip
    """
    ci = pl.program_id(2)

    @pl.when(ci == 0)
    def _():
        acc_ref[...] = jnp.zeros_like(acc_ref)

    # Pack the K*K shifted views of the input tile into one strip (static
    # lane-offset slices), then run a single deep MXU matmul -> exactly one
    # accumulator read-modify-write per channel step.
    for t, off in enumerate(tap_offsets):
        strip_ref[t * cin_tile:(t + 1) * cin_tile, :] = \
            x_ref[0, 0, :, off:off + out_lanes]

    acc_ref[...] += jnp.dot(w_ref[0], strip_ref[...],
                            preferred_element_type=jnp.float32)

    @pl.when(ci == pl.num_programs(2) - 1)
    def _():
        y = acc_ref[...] + shift_ref[...]                     # BN (scale already in w)
        o_ref[0] = jnp.maximum(y, negative_slope * y).astype(o_ref.dtype)  # LeakyReLU


def basic_conv2d(x, w, gamma, beta, running_mean, running_var, *,
                 stride=1, padding=0, dilation=1, eps=1e-5, negative_slope=0.1,
                 cin_tile=None, spatial_tile_lanes=2048, compute_dtype=None):
    """x: (B, C_in, H, W); w: (C_out, C_in, K, K). Returns (B, C_out, H_out, W_out)."""
    B, C_in, H, W = x.shape
    C_out, C_in_w, KH, KW = w.shape
    assert C_in_w == C_in and KH == KW
    K, P, d = KH, padding, dilation
    if stride != 1:
        raise NotImplementedError("stride != 1 not implemented")  # TODO(synk)

    out_dtype = x.dtype
    compute_dtype = jnp.dtype(x.dtype if compute_dtype is None else compute_dtype)
    sub = 32 // compute_dtype.itemsize          # sublane multiple: 8 f32 / 16 bf16

    Hp, Wp = H + 2 * P, W + 2 * P
    H_out = Hp - d * (K - 1)
    W_out = Wp - d * (K - 1)
    assert H_out > 0 and W_out > 0

    # Row stride: 128-align when W is large enough that inflation is small
    # (cuts the per-tap lane misalignment from K*K distinct shifts to K).
    Wp_row = _round_up(Wp, 128) if Wp >= 96 else Wp

    # Flat output canvas: pixel (h, w) -> h*Wp_row + w; junk cols sliced later.
    L = H_out * Wp_row
    spatial_tile_lanes = _round_up(max(int(spatial_tile_lanes), 128), 128)
    if L <= spatial_tile_lanes:
        Lt, n_s = _round_up(L, 128), 1
    else:
        Lt = spatial_tile_lanes
        n_s = -(-L // Lt)

    tap_offsets = tuple(ky * d * Wp_row + kx * d
                        for ky in range(K) for kx in range(K))
    max_off = tap_offsets[-1]
    Lt_halo = _round_up(Lt + max_off, 128)          # per-tile input span (with halo)
    flat_total = (n_s - 1) * Lt + Lt_halo           # >= Hp * Wp_row by construction

    # --- channel padding / tiling (keeps blocks sublane-aligned) ---
    if cin_tile is None:
        cin_tile = C_in
    cin_tile = _round_up(cin_tile, sub)
    C_in_pad = _round_up(C_in, cin_tile)
    n_ci = C_in_pad // cin_tile
    C_out_pad = _round_up(C_out, sub)
    KKC = K * K * cin_tile

    # --- wrapper-side layout plumbing -------------------------------------
    # Zero-pad (channels + spatial), flatten with row stride Wp_row, and cut
    # into overlapping spatial tiles (halo duplicated once, wrapper-side).
    xp = jnp.pad(x, ((0, 0), (0, C_in_pad - C_in), (P, P), (P, Wp_row - W - P)))
    xp = xp.reshape(B, C_in_pad, Hp * Wp_row)
    xp = jnp.pad(xp, ((0, 0), (0, 0), (0, flat_total - Hp * Wp_row)))
    xp = xp.astype(compute_dtype)
    xt = jnp.stack([xp[:, :, s * Lt: s * Lt + Lt_halo] for s in range(n_s)], axis=1)
    # xt: (B, n_s, C_in_pad, Lt_halo)

    # Fold BatchNorm (inference / running stats): scale into weights, shift kept.
    inv_std = jax.lax.rsqrt(running_var.astype(jnp.float32) + eps)
    scale = gamma.astype(jnp.float32) * inv_std                      # (C_out,)
    shift = beta.astype(jnp.float32) - running_mean.astype(jnp.float32) * scale
    shift_pad = jnp.pad(shift, (0, C_out_pad - C_out)).reshape(C_out_pad, 1)

    w_folded = w.astype(jnp.float32) * scale[:, None, None, None]
    w_pad = jnp.pad(w_folded, ((0, C_out_pad - C_out), (0, C_in_pad - C_in),
                               (0, 0), (0, 0)))
    # (C_out_pad, C_in_pad, K, K) -> (n_ci, C_out_pad, K*K*cin_tile), inner order
    # (ky, kx, c_local) matching the strip packing in the kernel.
    w_r = jnp.transpose(w_pad, (0, 2, 3, 1)).reshape(C_out_pad, K, K, n_ci, cin_tile)
    w_r = jnp.transpose(w_r, (3, 0, 1, 2, 4)).reshape(n_ci, C_out_pad, KKC)
    w_r = w_r.astype(compute_dtype)

    kernel = functools.partial(_conv_bn_lrelu_kernel,
                               tap_offsets=tap_offsets, out_lanes=Lt,
                               cin_tile=cin_tile, negative_slope=negative_slope)

    canvas = pl.pallas_call(
        kernel,
        out_shape=jax.ShapeDtypeStruct((B, C_out_pad, n_s * Lt), out_dtype),
        grid_spec=pltpu.PrefetchScalarGridSpec(
            num_scalar_prefetch=0,
            grid=(B, n_s, n_ci),
            in_specs=[
                # Constant block index when n_ci == 1 -> weights DMA'd once.
                pl.BlockSpec((1, C_out_pad, KKC), lambda b, s, ci: (ci, 0, 0)),
                pl.BlockSpec((C_out_pad, 1), lambda b, s, ci: (0, 0)),
                pl.BlockSpec((1, 1, cin_tile, Lt_halo), lambda b, s, ci: (b, s, ci, 0)),
            ],
            out_specs=pl.BlockSpec((1, C_out_pad, Lt), lambda b, s, ci: (b, 0, s)),
            scratch_shapes=[pltpu.VMEM((C_out_pad, Lt), jnp.float32),
                            pltpu.VMEM((KKC, Lt), compute_dtype)],
        ),
        compiler_params=pltpu.CompilerParams(
            dimension_semantics=("parallel", "parallel", "arbitrary"),
            vmem_limit_bytes=_vmem_limit_bytes(),
        ),
    )(w_r, shift_pad, xt)

    # Extract valid pixels from the row-stride-Wp_row canvas.
    out = canvas[:, :C_out, :L].reshape(B, C_out, H_out, Wp_row)[:, :, :, :W_out]
    return out


def reference(x, w, gamma, beta, mean, var, *, padding, dilation=1,
              eps=1e-5, negative_slope=0.1):
    """Pure-JAX reference mirroring the PyTorch forward (inference-mode BN)."""
    y = jax.lax.conv_general_dilated(
        x, w, window_strides=(1, 1),
        padding=[(padding, padding), (padding, padding)],
        rhs_dilation=(dilation, dilation),
        dimension_numbers=("NCHW", "OIHW", "NCHW"),
        precision=jax.lax.Precision.HIGHEST)
    scale = gamma / jnp.sqrt(var + eps)
    y = y * scale[None, :, None, None] + (beta - mean * scale)[None, :, None, None]
    return jnp.where(y > 0, y, negative_slope * y)


if __name__ == "__main__":
    key = jax.random.PRNGKey(0)
    k1, k2, k3, k4, k5, k6, k7, k8 = jax.random.split(key, 8)

    # --- Case 1: BasicConv2d(4 -> 8, kernel=3, pad=1), f32 -----------------
    B, C_in, C_out, H, W = 2, 4, 8, 16, 16
    K, PAD = 3, 1
    x = jax.random.normal(k1, (B, C_in, H, W), dtype=jnp.float32)
    bound = 1.0 / ((C_in * K * K) ** 0.5)     # PyTorch default init scale
    w = jax.random.uniform(k2, (C_out, C_in, K, K), jnp.float32, -bound, bound)
    gamma = jax.random.uniform(k3, (C_out,), jnp.float32, 0.5, 1.5)
    beta = 0.1 * jax.random.normal(k4, (C_out,), dtype=jnp.float32)
    mean = 0.1 * jax.random.normal(k5, (C_out,), dtype=jnp.float32)
    var = jax.random.uniform(k6, (C_out,), jnp.float32, 0.5, 1.5)

    out = basic_conv2d(x, w, gamma, beta, mean, var,
                       stride=1, padding=PAD, dilation=1)
    out = jax.block_until_ready(out)
    ref = reference(x, w, gamma, beta, mean, var, padding=PAD, dilation=1)
    assert out.shape == ref.shape == (B, C_out, H, W)
    assert jnp.allclose(out, ref, atol=5e-4, rtol=5e-4), "f32 mismatch vs reference"

    # --- Case 1b: same layer, bf16 compute path (f32 accumulation) ---------
    out_bf = basic_conv2d(x, w, gamma, beta, mean, var, stride=1, padding=PAD,
                          dilation=1, compute_dtype=jnp.bfloat16)
    out_bf = jax.block_until_ready(out_bf)
    assert jnp.allclose(out_bf, ref, atol=1e-1, rtol=1e-1), "bf16 mismatch vs reference"

    # --- Case 2: dilated conv, channel tiling (n_ci=2) + spatial tiling ----
    B2, C_in2, C_out2, H2, W2 = 1, 16, 8, 16, 16
    K2, PAD2, DIL2 = 3, 2, 2
    x2 = jax.random.normal(k7, (B2, C_in2, H2, W2), dtype=jnp.float32)
    bound2 = 1.0 / ((C_in2 * K2 * K2) ** 0.5)
    w2 = jax.random.uniform(k8, (C_out2, C_in2, K2, K2), jnp.float32, -bound2, bound2)
    out2 = basic_conv2d(x2, w2, gamma, beta, mean, var, stride=1, padding=PAD2,
                        dilation=DIL2, cin_tile=8, spatial_tile_lanes=128)
    out2 = jax.block_until_ready(out2)
    ref2 = reference(x2, w2, gamma, beta, mean, var, padding=PAD2, dilation=DIL2)
    assert out2.shape == ref2.shape
    assert jnp.allclose(out2, ref2, atol=5e-4, rtol=5e-4), "tiled/dilated mismatch"

    print("KERNEL_OK")
</pallas_src>

<mosaic_0001>
module attributes {stable_mosaic.version = 11 : i64} {
  func.func @_conv_bn_lrelu_kernel(%arg0: i32, %arg1: i32, %arg2: i32, %arg3: memref<1x8x72xf32, #tpu.memory_space<vmem>>, %arg4: memref<8x1xf32, #tpu.memory_space<vmem>>, %arg5: memref<1x1x8x512xf32, #tpu.memory_space<vmem>>, %arg6: memref<1x8x384xf32, #tpu.memory_space<vmem>>, %arg7: memref<8x384xf32, #tpu.memory_space<vmem>>, %arg8: memref<72x384xf32, #tpu.memory_space<vmem>>) attributes {dimension_semantics = [#tpu.dimension_semantics<parallel>, #tpu.dimension_semantics<parallel>, #tpu.dimension_semantics<arbitrary>], iteration_bounds = array<i64: 2, 1, 1>, scalar_prefetch = 0 : i64, scratch_operands = 2 : i64, tpu.core_type = #tpu.core_type<tc>, window_params = [{transform_indices = @transform_0, window_bounds = array<i64: 1, 8, 72>}, {pipeline_mode = #tpu.pipeline_mode<synchronous>, transform_indices = @transform_1, window_bounds = array<i64: 8, 1>}, {transform_indices = @transform_2, window_bounds = array<i64: 1, 1, 8, 512>}, {transform_indices = @transform_3, window_bounds = array<i64: 1, 8, 384>}]} {
    %c0_i32 = arith.constant 0 : i32
    %0 = arith.cmpi eq, %arg2, %c0_i32 : i32
    %1 = arith.extui %0 : i1 to i32
    %c0_i32_0 = arith.constant 0 : i32
    %2 = arith.cmpi ne, %1, %c0_i32_0 : i32
    scf.if %2 {
      %cst_49 = arith.constant 0.000000e+00 : f32
      %40 = vector.broadcast %cst_49 : f32 to vector<8x384xf32>
      %c0_50 = arith.constant 0 : index
      %c0_51 = arith.constant 0 : index
      %41 = vector.load %arg7[%c0_50, %c0_51] : memref<8x384xf32, #tpu.memory_space<vmem>>, vector<8x384xf32>
      tpu.vector_store %arg7[%c0_50, %c0_51], %40 {strides = array<i32>} : memref<8x384xf32, #tpu.memory_space<vmem>>, vector<8x384xf32>,
    } else {
    }
    %c0 = arith.constant 0 : index
    %c0_1 = arith.constant 0 : index
    %c0_2 = arith.constant 0 : index
    %c0_3 = arith.constant 0 : index
    %3 = vector.load %arg5[%c0, %c0_1, %c0_2, %c0_3] : memref<1x1x8x512xf32, #tpu.memory_space<vmem>>, vector<1x1x8x384xf32>
    %4 = vector.shape_cast %3 : vector<1x1x8x384xf32> to vector<8x384xf32>
    %c0_4 = arith.constant 0 : index
    %c0_5 = arith.constant 0 : index
    %5 = vector.load %arg8[%c0_4, %c0_5] : memref<72x384xf32, #tpu.memory_space<vmem>>, vector<8x384xf32>
    tpu.vector_store %arg8[%c0_4, %c0_5], %4 {strides = array<i32>} : memref<72x384xf32, #tpu.memory_space<vmem>>, vector<8x384xf32>,
    %c0_6 = arith.constant 0 : index
    %c0_7 = arith.constant 0 : index
    %c0_8 = arith.constant 0 : index
    %c1 = arith.constant 1 : index
    %6 = vector.load %arg5[%c0_6, %c0_7, %c0_8, %c1] : memref<1x1x8x512xf32, #tpu.memory_space<vmem>>, vector<1x1x8x384xf32>
    %7 = vector.shape_cast %6 : vector<1x1x8x384xf32> to vector<8x384xf32>
    %c8 = arith.constant 8 : index
    %c0_9 = arith.constant 0 : index
    %8 = vector.load %arg8[%c8, %c0_9] : memref<72x384xf32, #tpu.memory_space<vmem>>, vector<8x384xf32>
    tpu.vector_store %arg8[%c8, %c0_9], %7 {strides = array<i32>} : memref<72x384xf32, #tpu.memory_space<vmem>>, vector<8x384xf32>,
    %c0_10 = arith.constant 0 : index
    %c0_11 = arith.constant 0 : index
    %c0_12 = arith.constant 0 : index
    %c2 = arith.constant 2 : index
    %9 = vector.load %arg5[%c0_10, %c0_11, %c0_12, %c2] : memref<1x1x8x512xf32, #tpu.memory_space<vmem>>, vector<1x1x8x384xf32>
    %10 = vector.shape_cast %9 : vector<1x1x8x384xf32> to vector<8x384xf32>
    %c16 = arith.constant 16 : index
    %c0_13 = arith.constant 0 : index
    %11 = vector.load %arg8[%c16, %c0_13] : memref<72x384xf32, #tpu.memory_space<vmem>>, vector<8x384xf32>
    tpu.vector_store %arg8[%c16, %c0_13], %10 {strides = array<i32>} : memref<72x384xf32, #tpu.memory_space<vmem>>, vector<8x384xf32>,
    %c0_14 = arith.constant 0 : index
    %c0_15 = arith.constant 0 : index
    %c0_16 = arith.constant 0 : index
    %c18 = arith.constant 18 : index
    %12 = vector.load %arg5[%c0_14, %c0_15, %c0_16, %c18] : memref<1x1x8x512xf32, #tpu.memory_space<vmem>>, vector<1x1x8x384xf32>
    %13 = vector.shape_cast %12 : vector<1x1x8x384xf32> to vector<8x384xf32>
    %c24 = arith.constant 24 : index
    %c0_17 = arith.constant 0 : index
    %14 = vector.load %arg8[%c24, %c0_17] : memref<72x384xf32, #tpu.memory_space<vmem>>, vector<8x384xf32>
    tpu.vector_store %arg8[%c24, %c0_17], %13 {strides = array<i32>} : memref<72x384xf32, #tpu.memory_space<vmem>>, vector<8x384xf32>,
    %c0_18 = arith.constant 0 : index
    %c0_19 = arith.constant 0 : index
    %c0_20 = arith.constant 0 : index
    %c19 = arith.constant 19 : index
    %15 = vector.load %arg5[%c0_18, %c0_19, %c0_20, %c19] : memref<1x1x8x512xf32, #tpu.memory_space<vmem>>, vector<1x1x8x384xf32>
    %16 = vector.shape_cast %15 : vector<1x1x8x384xf32> to vector<8x384xf32>
    %c32 = arith.constant 32 : index
    %c0_21 = arith.constant 0 : index
    %17 = vector.load %arg8[%c32, %c0_21] : memref<72x384xf32, #tpu.memory_space<vmem>>, vector<8x384xf32>
    tpu.vector_store %arg8[%c32, %c0_21], %16 {strides = array<i32>} : memref<72x384xf32, #tpu.memory_space<vmem>>, vector<8x384xf32>,
    %c0_22 = arith.constant 0 : index
    %c0_23 = arith.constant 0 : index
    %c0_24 = arith.constant 0 : index
    %c20 = arith.constant 20 : index
    %18 = vector.load %arg5[%c0_22, %c0_23, %c0_24, %c20] : memref<1x1x8x512xf32, #tpu.memory_space<vmem>>, vector<1x1x8x384xf32>
    %19 = vector.shape_cast %18 : vector<1x1x8x384xf32> to vector<8x384xf32>
    %c40 = arith.constant 40 : index
    %c0_25 = arith.constant 0 : index
    %20 = vector.load %arg8[%c40, %c0_25] : memref<72x384xf32, #tpu.memory_space<vmem>>, vector<8x384xf32>
    tpu.vector_store %arg8[%c40, %c0_25], %19 {strides = array<i32>} : memref<72x384xf32, #tpu.memory_space<vmem>>, vector<8x384xf32>,
    %c0_26 = arith.constant 0 : index
    %c0_27 = arith.constant 0 : index
    %c0_28 = arith.constant 0 : index
    %c36 = arith.constant 36 : index
    %21 = vector.load %arg5[%c0_26, %c0_27, %c0_28, %c36] : memref<1x1x8x512xf32, #tpu.memory_space<vmem>>, vector<1x1x8x384xf32>
    %22 = vector.shape_cast %21 : vector<1x1x8x384xf32> to vector<8x384xf32>
    %c48 = arith.constant 48 : index
    %c0_29 = arith.constant 0 : index
    %23 = vector.load %arg8[%c48, %c0_29] : memref<72x384xf32, #tpu.memory_space<vmem>>, vector<8x384xf32>
    tpu.vector_store %arg8[%c48, %c0_29], %22 {strides = array<i32>} : memref<72x384xf32, #tpu.memory_space<vmem>>, vector<8x384xf32>,
    %c0_30 = arith.constant 0 : index
    %c0_31 = arith.constant 0 : index
    %c0_32 = arith.constant 0 : index
    %c37 = arith.constant 37 : index
    %24 = vector.load %arg5[%c0_30, %c0_31, %c0_32, %c37] : memref<1x1x8x512xf32, #tpu.memory_space<vmem>>, vector<1x1x8x384xf32>
    %25 = vector.shape_cast %24 : vector<1x1x8x384xf32> to vector<8x384xf32>
    %c56 = arith.constant 56 : index
    %c0_33 = arith.constant 0 : index
    %26 = vector.load %arg8[%c56, %c0_33] : memref<72x384xf32, #tpu.memory_space<vmem>>, vector<8x384xf32>
    tpu.vector_store %arg8[%c56, %c0_33], %25 {strides = array<i32>} : memref<72x384xf32, #tpu.memory_space<vmem>>, vector<8x384xf32>,
    %c0_34 = arith.constant 0 : index
    %c0_35 = arith.constant 0 : index
    %c0_36 = arith.constant 0 : index
    %c38 = arith.constant 38 : index
    %27 = vector.load %arg5[%c0_34, %c0_35, %c0_36, %c38] : memref<1x1x8x512xf32, #tpu.memory_space<vmem>>, vector<1x1x8x384xf32>
    %28 = vector.shape_cast %27 : vector<1x1x8x384xf32> to vector<8x384xf32>
    %c64 = arith.constant 64 : index
    %c0_37 = arith.constant 0 : index
    %29 = vector.load %arg8[%c64, %c0_37] : memref<72x384xf32, #tpu.memory_space<vmem>>, vector<8x384xf32>
    tpu.vector_store %arg8[%c64, %c0_37], %28 {strides = array<i32>} : memref<72x384xf32, #tpu.memory_space<vmem>>, vector<8x384xf32>,
    %c0_38 = arith.constant 0 : index
    %c0_39 = arith.constant 0 : index
    %30 = vector.load %arg7[%c0_38, %c0_39] : memref<8x384xf32, #tpu.memory_space<vmem>>, vector<8x384xf32>
    %c0_40 = arith.constant 0 : index
    %c0_41 = arith.constant 0 : index
    %c0_42 = arith.constant 0 : index
    %31 = vector.load %arg3[%c0_40, %c0_41, %c0_42] : memref<1x8x72xf32, #tpu.memory_space<vmem>>, vector<1x8x72xf32>
    %32 = vector.shape_cast %31 : vector<1x8x72xf32> to vector<8x72xf32>
    %c0_43 = arith.constant 0 : index
    %c0_44 = arith.constant 0 : index
    %33 = vector.load %arg8[%c0_43, %c0_44] : memref<72x384xf32, #tpu.memory_space<vmem>>, vector<72x384xf32>
    %cst = arith.constant dense<0.000000e+00> : vector<8x384xf32>
    %34 = tpu.matmul %32, %33, %cst {dimension_numbers = #tpu.dot_dimension_numbers<[1], [0], [0], [1], [0, 0, 1, 1], [], []>} : vector<8x72xf32>, vector<72x384xf32>, vector<8x384xf32> -> vector<8x384xf32>
    %35 = arith.addf %30, %34 : vector<8x384xf32>
    %c0_45 = arith.constant 0 : index
    %c0_46 = arith.constant 0 : index
    %36 = vector.load %arg7[%c0_45, %c0_46] : memref<8x384xf32, #tpu.memory_space<vmem>>, vector<8x384xf32>
    tpu.vector_store %arg7[%c0_45, %c0_46], %35 {strides = array<i32>} : memref<8x384xf32, #tpu.memory_space<vmem>>, vector<8x384xf32>,
    %c0_i32_47 = arith.constant 0 : i32
    %37 = arith.cmpi eq, %arg2, %c0_i32_47 : i32
    %38 = arith.extui %37 : i1 to i32
    %c0_i32_48 = arith.constant 0 : i32
    %39 = arith.cmpi ne, %38, %c0_i32_48 : i32
    scf.if %39 {
      %c0_49 = arith.constant 0 : index
      %c0_50 = arith.constant 0 : index
      %40 = vector.load %arg7[%c0_49, %c0_50] : memref<8x384xf32, #tpu.memory_space<vmem>>, vector<8x384xf32>
      %c0_51 = arith.constant 0 : index
      %c0_52 = arith.constant 0 : index
      %41 = vector.load %arg4[%c0_51, %c0_52] : memref<8x1xf32, #tpu.memory_space<vmem>>, vector<8x1xf32>
      %42 = vector.broadcast %41 : vector<8x1xf32> to vector<8x384xf32>
      %43 = arith.addf %40, %42 : vector<8x384xf32>
      %cst_53 = arith.constant 1.000000e-01 : f32
      %44 = vector.broadcast %cst_53 : f32 to vector<8x384xf32>
      %45 = arith.mulf %44, %43 : vector<8x384xf32>
      %46 = arith.maximumf %43, %45 : vector<8x384xf32>
      %c0_54 = arith.constant 0 : index
      %c0_55 = arith.constant 0 : index
      %c0_56 = arith.constant 0 : index
      %47 = vector.load %arg6[%c0_54, %c0_55, %c0_56] : memref<1x8x384xf32, #tpu.memory_space<vmem>>, vector<1x8x384xf32>
      %48 = vector.shape_cast %47 : vector<1x8x384xf32> to vector<8x384xf32>
      %49 = vector.shape_cast %46 : vector<8x384xf32> to vector<1x8x384xf32>
      tpu.vector_store %arg6[%c0_54, %c0_55, %c0_56], %49 {strides = array<i32>} : memref<1x8x384xf32, #tpu.memory_space<vmem>>, vector<1x8x384xf32>,
    } else {
    }
    return
  }
  func.func @transform_0(%arg0: i32, %arg1: i32, %arg2: i32) -> (i32, i32, i32) {
    %c0_i32 = arith.constant 0 : i32
    %c0_i32_0 = arith.constant 0 : i32
    %c0_i32_1 = arith.constant 0 : i32
    return %arg2, %c0_i32, %c0_i32_0 : i32, i32, i32
  }
  func.func @transform_1(%arg0: i32, %arg1: i32, %arg2: i32) -> (i32, i32) {
    %c0_i32 = arith.constant 0 : i32
    %c0_i32_0 = arith.constant 0 : i32
    %c0_i32_1 = arith.constant 0 : i32
    return %c0_i32, %c0_i32_0 : i32, i32
  }
  func.func @transform_2(%arg0: i32, %arg1: i32, %arg2: i32) -> (i32, i32, i32, i32) {
    %c0_i32 = arith.constant 0 : i32
    %c0_i32_0 = arith.constant 0 : i32
    return %arg0, %arg1, %arg2, %c0_i32 : i32, i32, i32, i32
  }
  func.func @transform_3(%arg0: i32, %arg1: i32, %arg2: i32) -> (i32, i32, i32) {
    %c0_i32 = arith.constant 0 : i32
    %c0_i32_0 = arith.constant 0 : i32
    return %arg0, %c0_i32, %arg1 : i32, i32, i32
  }
}

</mosaic_0001>

<llo_original>
// kernel: tpu_custom_call.1
$region0: #{tpu_custom_call.1}
  #allocation0 [shape = 'u32[]', space=smem, size = 0x4, offset = 0x4, fixed_abs, tag = 'smem constant byte address 0x4 - core index']
  #allocation1 [shape = 'u32[144,128]{1,0:T(1,128)}', space=vmem, size = 0x12000, scoped, tag = 'internal scratch']
  #allocation2 [shape = 'f32[8,384]{1,0:T(8,128)}', space=vmem, size = 0x3000, scoped, tag = 'scratch operand']
  #allocation3 [shape = 'f32[72,384]{1,0:T(8,128)}', space=vmem, size = 0x1b000, scoped, tag = 'scratch operand']
  %s0 = inlined_call_operand.vmem [shape: f32[1,8,72], index: 0, kind: input, shape index: {}]
  %s1 = inlined_call_operand.vmem [shape: f32[8,1], index: 1, kind: input, shape index: {}]
  %s2 = inlined_call_operand.hbm [shape: f32[2,1,8,512], index: 2, kind: input, shape index: {}]
  %s3 = inlined_call_operand.hbm [shape: f32[2,8,384], index: 3, kind: output, shape index: {}]
  %s4 = sld [smem:[#allocation0]]
  $region57: #{tpu_custom_call.1} parent=0
    _
  %s6 = ssub.s32 1, %s4
  %s7 = scalar_select 0, %s6, %s4
  $region1: #{tpu_custom_call.1} parent=0
    #allocation4 [shape = 'u8[32768]{0}', space=vmem, size = 0x8000, scoped, tag = 'input window, operand 2']
    #allocation5 [shape = 's32[2]{0}', space=sflag, size = 0x8, scoped, tag = 'scoped memory for tpu_custom_call.1']
    #allocation6 [shape = 's32[2]{0}', space=sflag, size = 0x8, scoped, tag = 'scoped memory for tpu_custom_call.1']
    #allocation7 [shape = 'u8[24576]{0}', space=vmem, size = 0x6000, scoped, tag = 'output window, operand 0']
    %8 = vsyncpa [#allocation5], 0
    %s9 = scalar_lea.sflag [#allocation5], 1
    %10 = vsyncpa %s9, 0
    %11 = vsyncpa [#allocation6], 0
    %s12 = scalar_lea.sflag [#allocation6], 1
    %13 = vsyncpa %s12, 0
    loop: start=0, step=1, limit=4
    $region2: #{tpu_custom_call.1} parent=1 // loop_pre_header
      _
    $region3: #{tpu_custom_call.1} parent=1 // loop_header
      %s15 = sphi 0, %s19
      %p16 = scmp.ge.s32.totalorder %s15, 4
      %s22 = sphi 0, %s41
      %s23 = sphi 0, %s37
      %s24 = sphi 0, %s33
      %s25 = sphi 0, %s22
      %s26 = sphi 0, %s23
      %s27 = sphi 0, %s24
      %s28 = sphi 0, %s25
      %s29 = sphi 0, %s26
      %s30 = sphi 0, %s27
      %s44 = sphi 0, %s46
      %s47 = sphi 0, %s44
      %s48 = sphi 0, %s47
      %s64 = sphi 0, %s48
      %s68 = sphi 0, %s68
      %s70 = sphi 0, %s68
      %s71 = sphi 0, %s70
      %s85 = sphi 0, %s71
      %s95 = sphi 0, %s97
      %s98 = sphi 0, %s95
      %s99 = sphi 0, %s98
      %s115 = sphi 0, %s99
      %s123 = sphi 0, %s125
      %s126 = sphi 0, %s123
      %s127 = sphi 0, %s126
      %s143 = sphi 0, %s127
    $region4: #{tpu_custom_call.1} parent=1 // loop_header_branch
      %18 = sbr.rel (%p16) target = $region8
    $region5: #{tpu_custom_call.1} parent=1 // loop_body
      %s20 = ssub.s32 %s15, 1
      %s21 = ssub.s32 %s15, 2
      %s31 = sadd.s32 1, %s24
      %p32 = scmp.ge.s32.totalorder %s31, 1
      %s33 = scalar_select %p32, 0, %s31
      %s34 = sadd.s32 1, %s23
      %s35 = scalar_select %p32, %s34, %s23
      %p36 = scmp.ge.s32.totalorder %s35, 1
      %s37 = scalar_select %p36, 0, %s35
      %s38 = sadd.s32 1, %s22
      %s39 = scalar_select %p36, %s38, %s22
      %p40 = scmp.ge.s32.totalorder %s39, 2
      %s41 = scalar_select %p40, 0, %s39
      %s42 = ssub.s32 %s24, %s33
      %p43 = scmp.eq.s32.totalorder %s42, 0
      %s45 = sadd.s32 %s44, 1
      %s46 = scalar_select %p43, %s44, %s45
      %p49 = pneg %p43
      %p50 = scmp.eq.s32.totalorder %s15, 1
      %p51 = por %p49, %p50
      %p52 = scmp.ne.s32.totalorder %s44, %s47
      %p53 = scmp.eq.s32.totalorder %s15, 0
      %p54 = por %p52, %p53
      %p55 = scmp.ne.s32.totalorder %s44, %s47
      %p56 = scmp.eq.s32.totalorder %s20, 1
      %p57 = por %p55, %p56
      %p58 = scmp.ne.s32.totalorder %s47, %s48
      %p59 = scmp.eq.s32.totalorder %s20, 0
      %p60 = por %p58, %p59
      %p61 = scmp.ne.s32.totalorder %s47, %s48
      %p62 = scmp.eq.s32.totalorder %s21, 1
      %p63 = por %p61, %p62
      %p65 = scmp.ne.s32.totalorder %s48, %s64
      %p66 = scmp.eq.s32.totalorder %s21, 0
      %p67 = por %p65, %p66
      %s69 = sadd.s32 %s68, 1
      %p72 = scmp.eq.s32.totalorder %s15, 1
      %p73 = scmp.ne.s32.totalorder %s68, %s70
      %p74 = scmp.eq.s32.totalorder %s15, 0
      %p75 = por %p73, %p74
      %p76 = scmp.ne.s32.totalorder %s68, %s70
      %p77 = scmp.eq.s32.totalorder %s20, 1
      %p78 = por %p76, %p77
      %p79 = scmp.ne.s32.totalorder %s70, %s71
      %p80 = scmp.eq.s32.totalorder %s20, 0
      %p81 = por %p79, %p80
      %p82 = scmp.ne.s32.totalorder %s70, %s71
      %p83 = scmp.eq.s32.totalorder %s21, 1
      %p84 = por %p82, %p83
      %p86 = scmp.ne.s32.totalorder %s71, %s85
      %p87 = scmp.eq.s32.totalorder %s21, 0
      %p88 = por %p86, %p87
      %s89 = ssub.s32 %s22, %s41
      %s90 = ssub.s32 %s23, %s37
      %s91 = sor.u32 %s89, %s90
      %s92 = ssub.s32 %s24, %s33
      %s93 = sor.u32 %s91, %s92
      %p94 = scmp.eq.s32.totalorder %s93, 0
      %s96 = sadd.s32 %s95, 1
      %s97 = scalar_select %p94, %s95, %s96
      %p100 = pneg %p94
      %p101 = scmp.eq.s32.totalorder %s15, 1
      %p102 = por %p100, %p101
      %p103 = scmp.ne.s32.totalorder %s95, %s98
      %p104 = scmp.eq.s32.totalorder %s15, 0
      %p105 = por %p103, %p104
      %p106 = scmp.ne.s32.totalorder %s95, %s98
      %p107 = scmp.eq.s32.totalorder %s20, 1
      %p108 = por %p106, %p107
      %p109 = scmp.ne.s32.totalorder %s98, %s99
      %p110 = scmp.eq.s32.totalorder %s20, 0
      %p111 = por %p109, %p110
      %p112 = scmp.ne.s32.totalorder %s98, %s99
      %p113 = scmp.eq.s32.totalorder %s21, 1
      %p114 = por %p112, %p113
      %p116 = scmp.ne.s32.totalorder %s99, %s115
      %p117 = scmp.eq.s32.totalorder %s21, 0
      %p118 = por %p116, %p117
      %s119 = ssub.s32 %s22, %s41
      %s120 = ssub.s32 %s23, %s37
      %s121 = sor.u32 %s119, %s120
      %p122 = scmp.eq.s32.totalorder %s121, 0
      %s124 = sadd.s32 %s123, 1
      %s125 = scalar_select %p122, %s123, %s124
      %p128 = pneg %p122
      %p129 = scmp.eq.s32.totalorder %s15, 1
      %p130 = por %p128, %p129
      %p131 = scmp.ne.s32.totalorder %s123, %s126
      %p132 = scmp.eq.s32.totalorder %s15, 0
      %p133 = por %p131, %p132
      %p134 = scmp.ne.s32.totalorder %s123, %s126
      %p135 = scmp.eq.s32.totalorder %s20, 1
      %p136 = por %p134, %p135
      %p137 = scmp.ne.s32.totalorder %s126, %s127
      %p138 = scmp.eq.s32.totalorder %s20, 0
      %p139 = por %p137, %p138
      %p140 = scmp.ne.s32.totalorder %s126, %s127
      %p141 = scmp.eq.s32.totalorder %s21, 1
      %p142 = por %p140, %p141
      %p144 = scmp.ne.s32.totalorder %s127, %s143
      %p145 = scmp.eq.s32.totalorder %s21, 0
      %p146 = por %p144, %p145
      %p147 = scmp.le.s32.totalorder 1, %s15
      %p148 = scmp.lt.s32.totalorder %s15, 3
      %p149 = pnand %p147, %p148
      %p150 = pneg %p149
      // Predicated region
      $region9: #{tpu_custom_call.1} parent=5 // pred_check
        _
      $region10: #{tpu_custom_call.1} parent=5 // pred_check_branch
        %152 = sbr.rel (%p149) target = $region12
      $region11: #{tpu_custom_call.1} parent=5 // pred_region
        %s153 = ssub.s32 %s15, 1
        // Predicated region
        $region13: #{tpu_custom_call.1} parent=11 // pred_check
          %p154 = pneg %p60
        $region14: #{tpu_custom_call.1} parent=11 // pred_check_branch
          %156 = sbr.rel (%p154) target = $region16
        $region15: #{tpu_custom_call.1} parent=11 // pred_region
          %p157 = scmp.lt.s32.totalorder %s27, 0
          %s158 = scalar_select %p157, %s27, 0
          %s159 = smul.addr %s158, 8
          %s160 = scalar_lea.vmem %s0, %s159
        $region16: #{tpu_custom_call.1} parent=11 // pred_fallthru
          _
        // Predicated region
        $region17: #{tpu_custom_call.1} parent=11 // pred_check
          %p161 = pneg %p81
        $region18: #{tpu_custom_call.1} parent=11 // pred_check_branch
          %163 = sbr.rel (%p161) target = $region20
        $region19: #{tpu_custom_call.1} parent=11 // pred_region
          _
        $region20: #{tpu_custom_call.1} parent=11 // pred_fallthru
          _
      $region12: #{tpu_custom_call.1} parent=5 // pred_fallthru
        _
      %p164 = scmp.lt.s32.totalorder %s15, 2
      // Predicated region
      $region21: #{tpu_custom_call.1} parent=5 // pred_check
        %p165 = pneg %p164
      $region22: #{tpu_custom_call.1} parent=5 // pred_check_branch
        %167 = sbr.rel (%p165) target = $region24
      $region23: #{tpu_custom_call.1} parent=5 // pred_region
        // Predicated region
        $region25: #{tpu_custom_call.1} parent=23 // pred_check
          %p168 = pneg %p105
        $region26: #{tpu_custom_call.1} parent=23 // pred_check_branch
          %170 = sbr.rel (%p168) target = $region28
        $region27: #{tpu_custom_call.1} parent=23 // pred_region
          %s171 = sand.u32 %s95, 1
          %s172 = scalar_lea.sflag [#allocation5], %s171
          %s173 = sand.u32 %s95, 1
          %s174 = smul.addr %s173, 32
          %s175 = scalar_lea.vmem [#allocation4], %s174
          %s177 = ssub.s32 512, 512
          %178 = vsyncadd %s172, %s177
          %s179 = smul.addr %s24, 4
          %s180 = smul.addr %s23, 4
          %s181 = sadd.s32 %s179, %s180
          %s182 = smul.addr %s22, 4
          %s183 = sadd.s32 %s181, %s182
          %s184 = smul.addr %s183, 128
          %s185 = scalar_lea.hbm %s2, %s184
          %s187 = sshll.u32 %s175, 4
          %s188 = int_to_ptr.vmem [resolvable:$true] %s187
          %190 = dma.hbm_to_vmem [thread:$0]  %s185, 512, %s188, %s172
        $region28: #{tpu_custom_call.1} parent=23 // pred_fallthru
          _
      $region24: #{tpu_custom_call.1} parent=5 // pred_fallthru
        _
      %p191 = scmp.le.s32.totalorder 1, %s15
      %p192 = scmp.lt.s32.totalorder %s15, 3
      %p193 = pnand %p191, %p192
      %p194 = pneg %p193
      // Predicated region
      $region29: #{tpu_custom_call.1} parent=5 // pred_check
        _
      $region30: #{tpu_custom_call.1} parent=5 // pred_check_branch
        %196 = sbr.rel (%p193) target = $region32
      $region31: #{tpu_custom_call.1} parent=5 // pred_region
        %s197 = ssub.s32 %s15, 1
        %s198 = sand.u32 %s98, 1
        %s199 = scalar_lea.sflag [#allocation5], %s198
        %s200 = sand.u32 %s98, 1
        %s201 = smul.addr %s200, 32
        %s202 = scalar_lea.vmem [#allocation4], %s201
        // Predicated region
        $region33: #{tpu_custom_call.1} parent=31 // pred_check
          %p203 = pneg %p111
        $region34: #{tpu_custom_call.1} parent=31 // pred_check_branch
          %205 = sbr.rel (%p203) target = $region36
        $region35: #{tpu_custom_call.1} parent=31 // pred_region
          %206 = dma.done %s199, 512
        $region36: #{tpu_custom_call.1} parent=31 // pred_fallthru
          _
        %p207 = scmp.lt.s32.totalorder %s27, 0
        %s208 = scalar_select %p207, %s27, 0
        %s209 = smul.addr %s208, 8
        %s210 = scalar_lea.vmem %s0, %s209
        %p211 = pneg %p60
        %p212 = pneg %p57
        %p213 = pneg %p81
        %p214 = pneg %p78
        %s215 = sand.u32 %s98, 1
        %s216 = scalar_lea.sflag [#allocation5], %s215
        %s217 = sand.u32 %s98, 1
        %s218 = smul.addr %s217, 32
        %s219 = scalar_lea.vmem [#allocation4], %s218
        %p220 = pneg %p111
        %p221 = pneg %p108
        %p222 = pneg %p139
        %p223 = pneg %p136
        %s224 = sand.u32 %s126, 1
        %s225 = scalar_lea.sflag [#allocation6], %s224
        %s226 = sand.u32 %s126, 1
        %s227 = smul.addr %s226, 24
        %s228 = scalar_lea.vmem [#allocation7], %s227
        %p229 = scmp.lt.s32.totalorder %s27, 0
        %s230 = scalar_select %p229, %s27, 0
        %s231 = smul.addr %s230, 8
        %s232 = scalar_lea.vmem %s0, %s231
        %s233 = smul.u32 3, %s26
        %p234 = scmp.eq.s32.totalorder %s27, 0
        // Predicated region
        $region37: #{tpu_custom_call.1} parent=31 // pred_check
          %p235 = pneg %p234
        $region38: #{tpu_custom_call.1} parent=31 // pred_check_branch
          %237 = sbr.rel (%p235) target = $region40
        $region39: #{tpu_custom_call.1} parent=31 // pred_region
          %238 = vst [vmem:[#allocation2] sm:$0xff] 0.0
          %239 = vst [vmem:[#allocation2 + $0x8] sm:$0xff] 0.0
          %240 = vst [vmem:[#allocation2 + $0x10] sm:$0xff] 0.0
        $region40: #{tpu_custom_call.1} parent=31 // pred_fallthru
          _
        %v241 = vld [vmem:[%s202] sm:$0xff]
        %v242 = vld [vmem:[%s202 + $0x8] sm:$0xff]
        %v243 = vld [vmem:[%s202 + $0x10] sm:$0xff]
        %244 = vst [vmem:[#allocation3] sm:$0xff] %v241
        %245 = vst [vmem:[#allocation3 + $0x8] sm:$0xff] %v242
        %246 = vst [vmem:[#allocation3 + $0x10] sm:$0xff] %v243
        %v247 = vld [vmem:[%s202] sm:$0xff]
        %v248 = vld [vmem:[%s202 + $0x8] sm:$0xff]
        %v249 = vld [vmem:[%s202 + $0x10] sm:$0xff]
        %v250 = vld [vmem:[%s202 + $0x18] sm:$0xff]
        %255 = vrot.lane.b32.xlu0 %v247, 127
        %v256 = vpop.permute.xlu0 %255
        %257 = vrot.lane.b32.xlu0 %v248, 127
        %v258 = vpop.permute.xlu0 %257
        %259 = vrot.lane.b32.xlu0 %v249, 127
        %v260 = vpop.permute.xlu0 %259
        %261 = vrot.lane.b32.xlu0 %v250, 127
        %v262 = vpop.permute.xlu0 %261
        %vm263 = vcmask 1039360
        %v264 = vsel %vm263, %v256, %v258
        %v265 = vsel %vm263, %v258, %v260
        %v266 = vsel %vm263, %v260, %v262
        %270 = vst [vmem:[#allocation3 + $0x18] sm:$0xff] %v264
        %271 = vst [vmem:[#allocation3 + $0x20] sm:$0xff] %v265
        %272 = vst [vmem:[#allocation3 + $0x28] sm:$0xff] %v266
        %v273 = vld [vmem:[%s202] sm:$0xff]
        %v274 = vld [vmem:[%s202 + $0x8] sm:$0xff]
        %v275 = vld [vmem:[%s202 + $0x10] sm:$0xff]
        %v276 = vld [vmem:[%s202 + $0x18] sm:$0xff]
        %281 = vrot.lane.b32.xlu0 %v273, 126
        %v282 = vpop.permute.xlu0 %281
        %283 = vrot.lane.b32.xlu0 %v274, 126
        %v284 = vpop.permute.xlu0 %283
        %285 = vrot.lane.b32.xlu0 %v275, 126
        %v286 = vpop.permute.xlu0 %285
        %287 = vrot.lane.b32.xlu0 %v276, 126
        %v288 = vpop.permute.xlu0 %287
        %vm289 = vcmask 1031168
        %v290 = vsel %vm289, %v282, %v284
        %v291 = vsel %vm289, %v284, %v286
        %v292 = vsel %vm289, %v286, %v288
        %296 = vst [vmem:[#allocation3 + $0x30] sm:$0xff] %v290
        %297 = vst [vmem:[#allocation3 + $0x38] sm:$0xff] %v291
        %298 = vst [vmem:[#allocation3 + $0x40] sm:$0xff] %v292
        %v299 = vld [vmem:[%s202] sm:$0xff]
        %v300 = vld [vmem:[%s202 + $0x8] sm:$0xff]
        %v301 = vld [vmem:[%s202 + $0x10] sm:$0xff]
        %v302 = vld [vmem:[%s202 + $0x18] sm:$0xff]
        %307 = vrot.lane.b32.xlu0 %v299, 110
        %v308 = vpop.permute.xlu0 %307
        %309 = vrot.lane.b32.xlu0 %v300, 110
        %v310 = vpop.permute.xlu0 %309
        %311 = vrot.lane.b32.xlu0 %v301, 110
        %v312 = vpop.permute.xlu0 %311
        %313 = vrot.lane.b32.xlu0 %v302, 110
        %v314 = vpop.permute.xlu0 %313
        %vm315 = vcmask 900096
        %v316 = vsel %vm315, %v308, %v310
        %v317 = vsel %vm315, %v310, %v312
        %v318 = vsel %vm315, %v312, %v314
        %322 = vst [vmem:[#allocation3 + $0x48] sm:$0xff] %v316
        %323 = vst [vmem:[#allocation3 + $0x50] sm:$0xff] %v317
        %324 = vst [vmem:[#allocation3 + $0x58] sm:$0xff] %v318
        %v325 = vld [vmem:[%s202] sm:$0xff]
        %v326 = vld [vmem:[%s202 + $0x8] sm:$0xff]
        %v327 = vld [vmem:[%s202 + $0x10] sm:$0xff]
        %v328 = vld [vmem:[%s202 + $0x18] sm:$0xff]
        %333 = vrot.lane.b32.xlu0 %v325, 109
        %v334 = vpop.permute.xlu0 %333
        %335 = vrot.lane.b32.xlu0 %v326, 109
        %v336 = vpop.permute.xlu0 %335
        %337 = vrot.lane.b32.xlu0 %v327, 109
        %v338 = vpop.permute.xlu0 %337
        %339 = vrot.lane.b32.xlu0 %v328, 109
        %v340 = vpop.permute.xlu0 %339
        %vm341 = vcmask 891904
        %v342 = vsel %vm341, %v334, %v336
        %v343 = vsel %vm341, %v336, %v338
        %v344 = vsel %vm341, %v338, %v340
        %348 = vst [vmem:[#allocation3 + $0x60] sm:$0xff] %v342
        %349 = vst [vmem:[#allocation3 + $0x68] sm:$0xff] %v343
        %350 = vst [vmem:[#allocation3 + $0x70] sm:$0xff] %v344
        %v351 = vld [vmem:[%s202] sm:$0xff]
        %v352 = vld [vmem:[%s202 + $0x8] sm:$0xff]
        %v353 = vld [vmem:[%s202 + $0x10] sm:$0xff]
        %v354 = vld [vmem:[%s202 + $0x18] sm:$0xff]
        %359 = vrot.lane.b32.xlu0 %v351, 108
        %v360 = vpop.permute.xlu0 %359
        %361 = vrot.lane.b32.xlu0 %v352, 108
        %v362 = vpop.permute.xlu0 %361
        %363 = vrot.lane.b32.xlu0 %v353, 108
        %v364 = vpop.permute.xlu0 %363
        %365 = vrot.lane.b32.xlu0 %v354, 108
        %v366 = vpop.permute.xlu0 %365
        %vm367 = vcmask 883712
        %v368 = vsel %vm367, %v360, %v362
        %v369 = vsel %vm367, %v362, %v364
        %v370 = vsel %vm367, %v364, %v366
        %374 = vst [vmem:[#allocation3 + $0x78] sm:$0xff] %v368
        %375 = vst [vmem:[#allocation3 + $0x80] sm:$0xff] %v369
        %376 = vst [vmem:[#allocation3 + $0x88] sm:$0xff] %v370
        %v377 = vld [vmem:[%s202] sm:$0xff]
        %v378 = vld [vmem:[%s202 + $0x8] sm:$0xff]
        %v379 = vld [vmem:[%s202 + $0x10] sm:$0xff]
        %v380 = vld [vmem:[%s202 + $0x18] sm:$0xff]
        %385 = vrot.lane.b32.xlu0 %v377, 92
        %v386 = vpop.permute.xlu0 %385
        %387 = vrot.lane.b32.xlu0 %v378, 92
        %v388 = vpop.permute.xlu0 %387
        %389 = vrot.lane.b32.xlu0 %v379, 92
        %v390 = vpop.permute.xlu0 %389
        %391 = vrot.lane.b32.xlu0 %v380, 92
        %v392 = vpop.permute.xlu0 %391
        %vm393 = vcmask 752640
        %v394 = vsel %vm393, %v386, %v388
        %v395 = vsel %vm393, %v388, %v390
        %v396 = vsel %vm393, %v390, %v392
        %400 = vst [vmem:[#allocation3 + $0x90] sm:$0xff] %v394
        %401 = vst [vmem:[#allocation3 + $0x98] sm:$0xff] %v395
        %402 = vst [vmem:[#allocation3 + $0xa0] sm:$0xff] %v396
        %v403 = vld [vmem:[%s202] sm:$0xff]
        %v404 = vld [vmem:[%s202 + $0x8] sm:$0xff]
        %v405 = vld [vmem:[%s202 + $0x10] sm:$0xff]
        %v406 = vld [vmem:[%s202 + $0x18] sm:$0xff]
        %411 = vrot.lane.b32.xlu0 %v403, 91
        %v412 = vpop.permute.xlu0 %411
        %413 = vrot.lane.b32.xlu0 %v404, 91
        %v414 = vpop.permute.xlu0 %413
        %415 = vrot.lane.b32.xlu0 %v405, 91
        %v416 = vpop.permute.xlu0 %415
        %417 = vrot.lane.b32.xlu0 %v406, 91
        %v418 = vpop.permute.xlu0 %417
        %vm419 = vcmask 744448
        %v420 = vsel %vm419, %v412, %v414
        %v421 = vsel %vm419, %v414, %v416
        %v422 = vsel %vm419, %v416, %v418
        %426 = vst [vmem:[#allocation3 + $0xa8] sm:$0xff] %v420
        %427 = vst [vmem:[#allocation3 + $0xb0] sm:$0xff] %v421
        %428 = vst [vmem:[#allocation3 + $0xb8] sm:$0xff] %v422
        %v429 = vld [vmem:[%s202] sm:$0xff]
        %v430 = vld [vmem:[%s202 + $0x8] sm:$0xff]
        %v431 = vld [vmem:[%s202 + $0x10] sm:$0xff]
        %v432 = vld [vmem:[%s202 + $0x18] sm:$0xff]
        %437 = vrot.lane.b32.xlu0 %v429, 90
        %v438 = vpop.permute.xlu0 %437
        %439 = vrot.lane.b32.xlu0 %v430, 90
        %v440 = vpop.permute.xlu0 %439
        %441 = vrot.lane.b32.xlu0 %v431, 90
        %v442 = vpop.permute.xlu0 %441
        %443 = vrot.lane.b32.xlu0 %v432, 90
        %v444 = vpop.permute.xlu0 %443
        %vm445 = vcmask 736256
        %v446 = vsel %vm445, %v438, %v440
        %v447 = vsel %vm445, %v440, %v442
        %v448 = vsel %vm445, %v442, %v444
        %452 = vst [vmem:[#allocation3 + $0xc0] sm:$0xff] %v446
        %453 = vst [vmem:[#allocation3 + $0xc8] sm:$0xff] %v447
        %454 = vst [vmem:[#allocation3 + $0xd0] sm:$0xff] %v448
        %v455 = vld [vmem:[#allocation2] sm:$0xff]
        %v456 = vld [vmem:[#allocation2 + $0x8] sm:$0xff]
        %v457 = vld [vmem:[#allocation2 + $0x10] sm:$0xff]
        %v458 = vld [vmem:[%s232] sm:$0xff]
        %v459 = vld [vmem:[#allocation3] sm:$0xff]
        %v460 = vld [vmem:[#allocation3 + $0x8] sm:$0xff]
        %v461 = vld [vmem:[#allocation3 + $0x10] sm:$0xff]
        %v462 = vld [vmem:[#allocation3 + $0x18] sm:$0xff]
        %v463 = vld [vmem:[#allocation3 + $0x20] sm:$0xff]
        %v464 = vld [vmem:[#allocation3 + $0x28] sm:$0xff]
        %v465 = vld [vmem:[#allocation3 + $0x30] sm:$0xff]
        %v466 = vld [vmem:[#allocation3 + $0x38] sm:$0xff]
        %v467 = vld [vmem:[#allocation3 + $0x40] sm:$0xff]
        %v468 = vld [vmem:[#allocation3 + $0x48] sm:$0xff]
        %v469 = vld [vmem:[#allocation3 + $0x50] sm:$0xff]
        %v470 = vld [vmem:[#allocation3 + $0x58] sm:$0xff]
        %v471 = vld [vmem:[#allocation3 + $0x60] sm:$0xff]
        %v472 = vld [vmem:[#allocation3 + $0x68] sm:$0xff]
        %v473 = vld [vmem:[#allocation3 + $0x70] sm:$0xff]
        %v474 = vld [vmem:[#allocation3 + $0x78] sm:$0xff]
        %v475 = vld [vmem:[#allocation3 + $0x80] sm:$0xff]
        %v476 = vld [vmem:[#allocation3 + $0x88] sm:$0xff]
        %v477 = vld [vmem:[#allocation3 + $0x90] sm:$0xff]
        %v478 = vld [vmem:[#allocation3 + $0x98] sm:$0xff]
        %v479 = vld [vmem:[#allocation3 + $0xa0] sm:$0xff]
        %v480 = vld [vmem:[#allocation3 + $0xa8] sm:$0xff]
        %v481 = vld [vmem:[#allocation3 + $0xb0] sm:$0xff]
        %v482 = vld [vmem:[#allocation3 + $0xb8] sm:$0xff]
        %v483 = vld [vmem:[#allocation3 + $0xc0] sm:$0xff]
        %v484 = vld [vmem:[#allocation3 + $0xc8] sm:$0xff]
        %v485 = vld [vmem:[#allocation3 + $0xd0] sm:$0xff]
        %vm486 = vcmask 588800
        %v488 = vsel %vm486, %v458, 0
        %490 = vmatprep.subr.mxu0 0.0
        %491 = vmatpush1.msra.mxu0 0.0
        %492 = vmatprep.subr.mxu0 0.0
        %493 = vmatpush1.msra.mxu0 0.0
        %494 = vmatprep.subr.mxu0 0.0
        %495 = vmatpush1.msra.mxu0 0.0
        %496 = vmatprep.subr.mxu0 0.0
        %497 = vmatpush1.msra.mxu0 0.0
        %498 = vmatprep.subr.mxu0 0.0
        %499 = vmatpush1.msra.mxu0 0.0
        %500 = vmatprep.subr.mxu0 0.0
        %501 = vmatpush1.msra.mxu0 0.0
        %502 = vmatprep.subr.mxu0 0.0
        %503 = vmatpush1.msra.mxu0 0.0
        %504 = vmatprep.subr.mxu0 %v484
        %505 = vmatpush1.msra.mxu0 %v483
        %506 = vmatprep.subr.mxu0 %v481
        %507 = vmatpush1.msra.mxu0 %v480
        %508 = vmatprep.subr.mxu0 %v478
        %509 = vmatpush1.msra.mxu0 %v477
        %510 = vmatprep.subr.mxu0 %v475
        %511 = vmatpush1.msra.mxu0 %v474
        %512 = vmatprep.subr.mxu0 %v472
        %513 = vmatpush1.msra.mxu0 %v471
        %514 = vmatprep.subr.mxu0 %v469
        %515 = vmatpush1.msra.mxu0 %v468
        %516 = vmatprep.subr.mxu0 %v466
        %517 = vmatpush1.msra.mxu0 %v465
        %518 = vmatprep.subr.mxu0 %v463
        %519 = vmatpush1.msra.mxu0 %v462
        %520 = vmatprep.subr.mxu0 %v460
        %521 = vmatpush1.msra.mxu0 %v459
        %522 = vmatprep.subr.mxu0 0.0
        %523 = vmatpush2.msra.mxu0 0.0
        %524 = vmatprep.subr.mxu0 0.0
        %525 = vmatpush2.msra.mxu0 0.0
        %526 = vmatprep.subr.mxu0 0.0
        %527 = vmatpush2.msra.mxu0 0.0
        %528 = vmatprep.subr.mxu0 0.0
        %529 = vmatpush2.msra.mxu0 0.0
        %530 = vmatprep.subr.mxu0 0.0
        %531 = vmatpush2.msra.mxu0 0.0
        %532 = vmatprep.subr.mxu0 0.0
        %533 = vmatpush2.msra.mxu0 0.0
        %534 = vmatprep.subr.mxu0 0.0
        %535 = vmatpush2.msra.mxu0 0.0
        %536 = vmatprep.subr.mxu0 0.0
        %537 = vmatpush2.msra.mxu0 0.0
        %538 = vmatprep.subr.mxu0 0.0
        %539 = vmatpush2.msra.mxu0 0.0
        %540 = vmatprep.subr.mxu0 0.0
        %541 = vmatpush2.msra.mxu0 0.0
        %542 = vmatprep.subr.mxu0 0.0
        %543 = vmatpush2.msra.mxu0 0.0
        %544 = vmatprep.subr.mxu0 0.0
        %545 = vmatpush2.msra.mxu0 0.0
        %546 = vmatprep.subr.mxu0 0.0
        %547 = vmatpush2.msra.mxu0 0.0
        %548 = vmatprep.subr.mxu0 0.0
        %549 = vmatpush2.msra.mxu0 0.0
        %550 = vmatprep.subr.mxu0 0.0
        %551 = vmatpush2.msra.mxu0 0.0
        %552 = vmatprep.subr.mxu0 0.0
        %553 = vmatpush2.msra.mxu0 0.0
        %554 = vmatprep.mubr.f32.mxu0 0.0
        %555 = vmatmul.mubr.f32.gmra.mxu0 %v488
        %v556 = vpop.f32.mrf.mxu0
        %v557 = vadd.f32 0.0, %v556
        %v558 = vpop.f32.mrf.mxu0
        %v559 = vadd.f32 0.0, %v558
        %560 = vdwg.mxu0
        %561 = vmatprep.subr.mxu0 0.0
        %562 = vmatpush1.msra.mxu0 0.0
        %563 = vmatprep.subr.mxu0 0.0
        %564 = vmatpush1.msra.mxu0 0.0
        %565 = vmatprep.subr.mxu0 0.0
        %566 = vmatpush1.msra.mxu0 0.0
        %567 = vmatprep.subr.mxu0 0.0
        %568 = vmatpush1.msra.mxu0 0.0
        %569 = vmatprep.subr.mxu0 0.0
        %570 = vmatpush1.msra.mxu0 0.0
        %571 = vmatprep.subr.mxu0 0.0
        %572 = vmatpush1.msra.mxu0 0.0
        %573 = vmatprep.subr.mxu0 0.0
        %574 = vmatpush1.msra.mxu0 0.0
        %575 = vmatprep.subr.mxu0 0.0
        %576 = vmatpush1.msra.mxu0 %v485
        %577 = vmatprep.subr.mxu0 0.0
        %578 = vmatpush1.msra.mxu0 %v482
        %579 = vmatprep.subr.mxu0 0.0
        %580 = vmatpush1.msra.mxu0 %v479
        %581 = vmatprep.subr.mxu0 0.0
        %582 = vmatpush1.msra.mxu0 %v476
        %583 = vmatprep.subr.mxu0 0.0
        %584 = vmatpush1.msra.mxu0 %v473
        %585 = vmatprep.subr.mxu0 0.0
        %586 = vmatpush1.msra.mxu0 %v470
        %587 = vmatprep.subr.mxu0 0.0
        %588 = vmatpush1.msra.mxu0 %v467
        %589 = vmatprep.subr.mxu0 0.0
        %590 = vmatpush1.msra.mxu0 %v464
        %591 = vmatprep.subr.mxu0 0.0
        %592 = vmatpush1.msra.mxu0 %v461
        %593 = vmatprep.subr.mxu0 0.0
        %594 = vmatpush2.msra.mxu0 0.0
        %595 = vmatprep.subr.mxu0 0.0
        %596 = vmatpush2.msra.mxu0 0.0
        %597 = vmatprep.subr.mxu0 0.0
        %598 = vmatpush2.msra.mxu0 0.0
        %599 = vmatprep.subr.mxu0 0.0
        %600 = vmatpush2.msra.mxu0 0.0
        %601 = vmatprep.subr.mxu0 0.0
        %602 = vmatpush2.msra.mxu0 0.0
        %603 = vmatprep.subr.mxu0 0.0
        %604 = vmatpush2.msra.mxu0 0.0
        %605 = vmatprep.subr.mxu0 0.0
        %606 = vmatpush2.msra.mxu0 0.0
        %607 = vmatprep.subr.mxu0 0.0
        %608 = vmatpush2.msra.mxu0 0.0
        %609 = vmatprep.subr.mxu0 0.0
        %610 = vmatpush2.msra.mxu0 0.0
        %611 = vmatprep.subr.mxu0 0.0
        %612 = vmatpush2.msra.mxu0 0.0
        %613 = vmatprep.subr.mxu0 0.0
        %614 = vmatpush2.msra.mxu0 0.0
        %615 = vmatprep.subr.mxu0 0.0
        %616 = vmatpush2.msra.mxu0 0.0
        %617 = vmatprep.subr.mxu0 0.0
        %618 = vmatpush2.msra.mxu0 0.0
        %619 = vmatprep.subr.mxu0 0.0
        %620 = vmatpush2.msra.mxu0 0.0
        %621 = vmatprep.subr.mxu0 0.0
        %622 = vmatpush2.msra.mxu0 0.0
        %623 = vmatprep.subr.mxu0 0.0
        %624 = vmatpush2.msra.mxu0 0.0
        %625 = vmatprep.mubr.f32.mxu0 0.0
        %626 = vmatmul.mubr.f32.gmra.mxu0 %v488
        %v627 = vpop.f32.mrf.mxu0
        %v628 = vadd.f32 0.0, %v627
        %v629 = vpop.f32.mrf.mxu0
        %630 = vdwg.mxu0
        %v631 = vadd.f32 %v455, %v557
        %v632 = vadd.f32 %v456, %v559
        %v633 = vadd.f32 %v457, %v628
        %634 = vst [vmem:[#allocation2] sm:$0xff] %v631
        %635 = vst [vmem:[#allocation2 + $0x8] sm:$0xff] %v632
        %636 = vst [vmem:[#allocation2 + $0x10] sm:$0xff] %v633
        // Predicated region
        $region41: #{tpu_custom_call.1} parent=31 // pred_check
          %p637 = pneg %p234
        $region42: #{tpu_custom_call.1} parent=31 // pred_check_branch
          %639 = sbr.rel (%p637) target = $region44
        $region43: #{tpu_custom_call.1} parent=31 // pred_region
          %v640 = vld [vmem:[#allocation2] sm:$0xff]
          %v641 = vld [vmem:[#allocation2 + $0x8] sm:$0xff]
          %v642 = vld [vmem:[#allocation2 + $0x10] sm:$0xff]
          %v643 = vld [vmem:[%s1] sm:$0xff]
          %645 = vset.pattern.permute.xlu0 0
          %646 = vperm.xlu0 %645, %v643
          %v647 = vpop.permute.xlu0 %646
          %v649 = vadd.f32 %v640, %v647
          %v650 = vadd.f32 %v641, %v647
          %v651 = vadd.f32 %v642, %v647
          %v652 = vmul.f32 %v649, 0.1
          %v653 = vmul.f32 %v650, 0.1
          %v654 = vmul.f32 %v651, 0.1
          %v655 = vmax.f32 %v649, %v652
          %v656 = vmax.f32 %v650, %v653
          %v657 = vmax.f32 %v651, %v654
          %658 = vst [vmem:[%s228] sm:$0xff] %v655
          %659 = vst [vmem:[%s228 + $0x8] sm:$0xff] %v656
          %660 = vst [vmem:[%s228 + $0x10] sm:$0xff] %v657
        $region44: #{tpu_custom_call.1} parent=31 // pred_fallthru
          _
        %s661 = sand.u32 %s126, 1
        %s662 = scalar_lea.sflag [#allocation6], %s661
        %s663 = sand.u32 %s126, 1
        %s664 = smul.addr %s663, 24
        %s665 = scalar_lea.vmem [#allocation7], %s664
        // Predicated region
        $region45: #{tpu_custom_call.1} parent=31 // pred_check
          %p666 = pneg %p136
        $region46: #{tpu_custom_call.1} parent=31 // pred_check_branch
          %668 = sbr.rel (%p666) target = $region48
        $region47: #{tpu_custom_call.1} parent=31 // pred_region
          %s669 = smul.u32 3, %s26
          %s671 = ssub.s32 384, 384
          %672 = vsyncadd %s662, %s671
          %s673 = smul.addr %s25, 3
          %s674 = sadd.s32 %s669, %s673
          %s675 = smul.addr %s674, 128
          %s676 = scalar_lea.hbm %s3, %s675
          %s678 = sshll.u32 %s665, 4
          %s679 = int_to_ptr.vmem [resolvable:$true] %s678
          %681 = dma.vmem_to_hbm [thread:$0]  %s679, 384, %s676, %s662
        $region48: #{tpu_custom_call.1} parent=31 // pred_fallthru
          _
      $region32: #{tpu_custom_call.1} parent=5 // pred_fallthru
        _
      %p682 = scmp.le.s32.totalorder 2, %s15
      // Predicated region
      $region49: #{tpu_custom_call.1} parent=5 // pred_check
        %p683 = pneg %p682
      $region50: #{tpu_custom_call.1} parent=5 // pred_check_branch
        %685 = sbr.rel (%p683) target = $region52
      $region51: #{tpu_custom_call.1} parent=5 // pred_region
        %s686 = ssub.s32 %s15, 2
        // Predicated region
        $region53: #{tpu_custom_call.1} parent=51 // pred_check
          %p687 = pneg %p142
        $region54: #{tpu_custom_call.1} parent=51 // pred_check_branch
          %689 = sbr.rel (%p687) target = $region56
        $region55: #{tpu_custom_call.1} parent=51 // pred_region
          %s690 = sand.u32 %s127, 1
          %s691 = scalar_lea.sflag [#allocation6], %s690
          %s692 = sand.u32 %s127, 1
          %s693 = smul.addr %s692, 24
          %s694 = scalar_lea.vmem [#allocation7], %s693
          %695 = dma.done %s691, 384
        $region56: #{tpu_custom_call.1} parent=51 // pred_fallthru
          _
      $region52: #{tpu_custom_call.1} parent=5 // pred_fallthru
        _
    $region6: #{tpu_custom_call.1} parent=1 // loop_footer
      %s19 = sadd.s32 1, %s15
    $region7: #{tpu_custom_call.1} parent=1 // loop_footer_branch
      %14 = sbr.rel target = $region3
    $region8: #{tpu_custom_call.1} parent=1 // loop_exit
      _
    %696 = vsyncpa [#allocation5], 1
    %s697 = scalar_lea.sflag [#allocation5], 1
    %698 = vsyncpa %s697, 1
    %699 = vsyncpa [#allocation6], 1
    %s700 = scalar_lea.sflag [#allocation6], 1
    %701 = vsyncpa %s700, 1

</llo_original>
